<compile_context>
chip_gen: v7x
topology: tpu7x:2x2x1
jax: 0.10.0
libtpu: 0.0.40
codegen_flags: <defaults>
</compile_context>

<pallas_src>
import functools

import jax
import jax.numpy as jnp
from jax.experimental import pallas as pl
from jax.experimental.pallas import tpu as pltpu

LANES = 128
SUBLANES = 8
MAX_BLOCK_ROWS = 1024     # (1024,128) f32 block = 512 KiB; 2 inputs x 2 bufs = 2 MiB VMEM
NSPLIT = 2                # leading "parallel" grid axis (megacore split on v7x)
PAD_LOGIT = -1e4          # exp(-|PAD_LOGIT|) == 0 in f32 -> padded elems contribute 0


def _round_up(n, m):
    return ((n + m - 1) // m) * m


def _partials_kernel(x_ref, t_ref, out_ref, *, block_rows):
    """Accumulate (bce_sum, intersection, total) vector partials.

    out_ref block is (1, 3, 8, 128) f32, resident in VMEM across the inner
    ("arbitrary") grid axis -> acts as the accumulator, written to HBM once.
    """
    i = pl.program_id(1)

    @pl.when(i == 0)
    def _():
        out_ref[...] = jnp.zeros_like(out_ref)

    x = x_ref[...].astype(jnp.float32)
    t = t_ref[...].astype(jnp.float32)

    # One shared transcendental base for BCE-with-logits and sigmoid.
    e = jnp.exp(-jnp.abs(x))
    bce = jnp.maximum(x, 0.0) - x * t + jnp.log1p(e)
    pred = jnp.where(x >= 0.0, 1.0, e) / (1.0 + e)        # == sigmoid(x), stable

    r = block_rows // SUBLANES

    def fold(v):
        # (block_rows, 128) -> (8, 128); split is on the (8,128) tile boundary,
        # so this is layout-preserving and the sum is plain VPU vreg adds.
        return v.reshape(r, SUBLANES, LANES).sum(axis=0)

    out_ref[0, 0, :, :] += fold(bce)
    out_ref[0, 1, :, :] += fold(pred * t)
    out_ref[0, 2, :, :] += fold(pred + t)


def calc_iou_loss(inputs, targets, *, bce_weight=0.5, smooth=1.0):
    """Pallas TPU implementation of calc_iou_loss.forward. Returns a scalar f32."""
    assert inputs.shape == targets.shape
    n_valid = inputs.size
    assert n_valid > 0
    assert n_valid < 2**31, "flat index space exceeds int32"

    rows = pl.cdiv(n_valid, LANES)
    rows_per_split = pl.cdiv(rows, NSPLIT)
    block_rows = min(MAX_BLOCK_ROWS, _round_up(rows_per_split, SUBLANES))
    steps = pl.cdiv(rows_per_split, block_rows)
    padded_rows = NSPLIT * steps * block_rows
    n_pad_elems = padded_rows * LANES
    pad = n_pad_elems - n_valid

    # Keep the model dtype for the DMA (no f32 upcast in the wrapper). Pad with
    # a large-negative logit / zero target so padded elements contribute 0 to
    # every partial sum -> no per-element masking in the hot loop.
    x_flat = jnp.ravel(inputs)
    t_flat = jnp.ravel(targets)
    if pad:
        x_flat = jnp.pad(x_flat, (0, pad), constant_values=PAD_LOGIT)
        t_flat = jnp.pad(t_flat, (0, pad), constant_values=0)
    x2d = x_flat.reshape(padded_rows, LANES)
    t2d = t_flat.reshape(padded_rows, LANES)

    kernel = functools.partial(_partials_kernel, block_rows=block_rows)
    in_map = lambda c, i: (c * steps + i, 0)

    cost = pl.CostEstimate(
        flops=10 * n_pad_elems,
        transcendentals=3 * n_pad_elems,
        bytes_accessed=int(x2d.size) * x2d.dtype.itemsize
        + int(t2d.size) * t2d.dtype.itemsize
        + NSPLIT * 3 * SUBLANES * LANES * 4,
    )

    partials = pl.pallas_call(
        kernel,
        out_shape=jax.ShapeDtypeStruct((NSPLIT, 3, SUBLANES, LANES), jnp.float32),
        grid_spec=pltpu.PrefetchScalarGridSpec(
            num_scalar_prefetch=0,
            grid=(NSPLIT, steps),
            in_specs=[
                pl.BlockSpec((block_rows, LANES), in_map),
                pl.BlockSpec((block_rows, LANES), in_map),
            ],
            out_specs=pl.BlockSpec((1, 3, SUBLANES, LANES),
                                   lambda c, i: (c, 0, 0, 0)),
        ),
        compiler_params=pltpu.CompilerParams(
            dimension_semantics=("parallel", "arbitrary")),
        cost_estimate=cost,
    )(x2d, t2d)

    # Thin JAX epilogue: fold (NSPLIT, 3, 8, 128) partials to 3 scalars and
    # apply the final scalar formula (also combines the per-core partials).
    sums = jnp.sum(partials, axis=(0, 2, 3))
    bce_mean = sums[0] / jnp.float32(n_valid)
    intersection = sums[1]
    union = sums[2] - intersection
    iou = 1.0 - (intersection + smooth) / (union + smooth)
    return bce_mean * bce_weight + iou * (1.0 - bce_weight)


def _reference(inputs, targets, bce_weight=0.5, smooth=1.0):
    x = inputs.astype(jnp.float32)
    t = targets.astype(jnp.float32)
    bce = jnp.mean(jnp.maximum(x, 0.0) - x * t + jnp.log1p(jnp.exp(-jnp.abs(x))))
    pred = jax.nn.sigmoid(x)
    inter = jnp.sum(pred * t)
    union = jnp.sum(pred + t) - inter
    iou = 1.0 - (inter + smooth) / (union + smooth)
    return bce * bce_weight + iou * (1.0 - bce_weight)


if __name__ == "__main__":
    key = jax.random.PRNGKey(0)
    k1, k2 = jax.random.split(key)
    # Small shapes consistent with a segmentation loss: NCHW logits + {0,1} mask.
    B, C, H, W = 2, 4, 16, 16
    logits = jax.random.normal(k1, (B, C, H, W), dtype=jnp.float32) * 2.0
    targets = (jax.random.uniform(k2, (B, C, H, W)) > 0.5).astype(jnp.float32)

    loss_fn = jax.jit(calc_iou_loss)
    loss = jax.block_until_ready(loss_fn(logits, targets))

    ref = jax.block_until_ready(_reference(logits, targets))
    assert jnp.allclose(loss, ref, rtol=1e-5, atol=1e-5), (loss, ref)
    print("KERNEL_OK")
</pallas_src>

<mosaic_0001>
module attributes {stable_mosaic.version = 11 : i64} {
  func.func @_partials_kernel(%arg0: i32, %arg1: i32, %arg2: memref<8x128xf32, #tpu.memory_space<vmem>>, %arg3: memref<8x128xf32, #tpu.memory_space<vmem>>, %arg4: memref<1x3x8x128xf32, #tpu.memory_space<vmem>>) attributes {dimension_semantics = [#tpu.dimension_semantics<parallel>, #tpu.dimension_semantics<arbitrary>], iteration_bounds = array<i64: 2, 1>, scalar_prefetch = 0 : i64, scratch_operands = 0 : i64, tpu.core_type = #tpu.core_type<tc>, window_params = [{transform_indices = @transform_0, window_bounds = array<i64: 8, 128>}, {transform_indices = @transform_1, window_bounds = array<i64: 8, 128>}, {transform_indices = @transform_2, window_bounds = array<i64: 1, 3, 8, 128>}]} {
    %c0_i32 = arith.constant 0 : i32
    %0 = arith.cmpi eq, %arg1, %c0_i32 : i32
    %1 = arith.extui %0 : i1 to i32
    %c0_i32_0 = arith.constant 0 : i32
    %2 = arith.cmpi ne, %1, %c0_i32_0 : i32
    scf.if %2 {
      %cst_33 = arith.constant 0.000000e+00 : f32
      %48 = vector.broadcast %cst_33 : f32 to vector<1x3x8x128xf32>
      %c0_34 = arith.constant 0 : index
      %c0_35 = arith.constant 0 : index
      %c0_36 = arith.constant 0 : index
      %c0_37 = arith.constant 0 : index
      %49 = vector.load %arg4[%c0_34, %c0_35, %c0_36, %c0_37] : memref<1x3x8x128xf32, #tpu.memory_space<vmem>>, vector<1x3x8x128xf32>
      tpu.vector_store %arg4[%c0_34, %c0_35, %c0_36, %c0_37], %48 {strides = array<i32>} : memref<1x3x8x128xf32, #tpu.memory_space<vmem>>, vector<1x3x8x128xf32>,
    } else {
    }
    %c0 = arith.constant 0 : index
    %c0_1 = arith.constant 0 : index
    %3 = vector.load %arg2[%c0, %c0_1] : memref<8x128xf32, #tpu.memory_space<vmem>>, vector<8x128xf32>
    %c0_2 = arith.constant 0 : index
    %c0_3 = arith.constant 0 : index
    %4 = vector.load %arg3[%c0_2, %c0_3] : memref<8x128xf32, #tpu.memory_space<vmem>>, vector<8x128xf32>
    %5 = math.absf %3 : vector<8x128xf32>
    %cst = arith.constant 0.000000e+00 : f32
    %6 = vector.broadcast %cst : f32 to vector<8x128xf32>
    %7 = arith.subf %6, %5 : vector<8x128xf32>
    %8 = math.exp %7 : vector<8x128xf32>
    %cst_4 = arith.constant 0.000000e+00 : f32
    %9 = vector.broadcast %cst_4 : f32 to vector<8x128xf32>
    %10 = arith.maximumf %3, %9 : vector<8x128xf32>
    %11 = arith.mulf %3, %4 : vector<8x128xf32>
    %12 = arith.subf %10, %11 : vector<8x128xf32>
    %13 = math.log1p %8 : vector<8x128xf32>
    %14 = arith.addf %12, %13 : vector<8x128xf32>
    %cst_5 = arith.constant 0.000000e+00 : f32
    %15 = vector.broadcast %cst_5 : f32 to vector<8x128xf32>
    %16 = arith.cmpf oge, %3, %15 : vector<8x128xf32>
    %cst_6 = arith.constant 1.000000e+00 : f32
    %17 = vector.broadcast %cst_6 : f32 to vector<8x128xf32>
    %18 = arith.select %16, %17, %8 : vector<8x128xi1>, vector<8x128xf32>
    %cst_7 = arith.constant 1.000000e+00 : f32
    %19 = vector.broadcast %cst_7 : f32 to vector<8x128xf32>
    %20 = arith.addf %19, %8 : vector<8x128xf32>
    %21 = arith.divf %18, %20 : vector<8x128xf32>
    %c0_8 = arith.constant 0 : index
    %c0_9 = arith.constant 0 : index
    %c0_10 = arith.constant 0 : index
    %c0_11 = arith.constant 0 : index
    %22 = vector.load %arg4[%c0_8, %c0_9, %c0_10, %c0_11] : memref<1x3x8x128xf32, #tpu.memory_space<vmem>>, vector<1x1x8x128xf32>
    %23 = vector.shape_cast %22 : vector<1x1x8x128xf32> to vector<8x128xf32>
    %24 = vector.shape_cast %14 : vector<8x128xf32> to vector<1x8x128xf32>
    %cst_12 = arith.constant dense<0.000000e+00> : vector<8x128xf32>
    %25 = vector.multi_reduction <add>, %24, %cst_12 [0] : vector<1x8x128xf32> to vector<8x128xf32>
    %26 = arith.addf %23, %25 : vector<8x128xf32>
    %c0_13 = arith.constant 0 : index
    %c0_14 = arith.constant 0 : index
    %c0_15 = arith.constant 0 : index
    %c0_16 = arith.constant 0 : index
    %27 = vector.load %arg4[%c0_13, %c0_14, %c0_15, %c0_16] : memref<1x3x8x128xf32, #tpu.memory_space<vmem>>, vector<1x1x8x128xf32>
    %28 = vector.shape_cast %27 : vector<1x1x8x128xf32> to vector<8x128xf32>
    %29 = vector.shape_cast %26 : vector<8x128xf32> to vector<1x1x8x128xf32>
    tpu.vector_store %arg4[%c0_13, %c0_14, %c0_15, %c0_16], %29 {strides = array<i32>} : memref<1x3x8x128xf32, #tpu.memory_space<vmem>>, vector<1x1x8x128xf32>,
    %c0_17 = arith.constant 0 : index
    %c1 = arith.constant 1 : index
    %c0_18 = arith.constant 0 : index
    %c0_19 = arith.constant 0 : index
    %30 = vector.load %arg4[%c0_17, %c1, %c0_18, %c0_19] : memref<1x3x8x128xf32, #tpu.memory_space<vmem>>, vector<1x1x8x128xf32>
    %31 = vector.shape_cast %30 : vector<1x1x8x128xf32> to vector<8x128xf32>
    %32 = arith.mulf %21, %4 : vector<8x128xf32>
    %33 = vector.shape_cast %32 : vector<8x128xf32> to vector<1x8x128xf32>
    %cst_20 = arith.constant dense<0.000000e+00> : vector<8x128xf32>
    %34 = vector.multi_reduction <add>, %33, %cst_20 [0] : vector<1x8x128xf32> to vector<8x128xf32>
    %35 = arith.addf %31, %34 : vector<8x128xf32>
    %c0_21 = arith.constant 0 : index
    %c1_22 = arith.constant 1 : index
    %c0_23 = arith.constant 0 : index
    %c0_24 = arith.constant 0 : index
    %36 = vector.load %arg4[%c0_21, %c1_22, %c0_23, %c0_24] : memref<1x3x8x128xf32, #tpu.memory_space<vmem>>, vector<1x1x8x128xf32>
    %37 = vector.shape_cast %36 : vector<1x1x8x128xf32> to vector<8x128xf32>
    %38 = vector.shape_cast %35 : vector<8x128xf32> to vector<1x1x8x128xf32>
    tpu.vector_store %arg4[%c0_21, %c1_22, %c0_23, %c0_24], %38 {strides = array<i32>} : memref<1x3x8x128xf32, #tpu.memory_space<vmem>>, vector<1x1x8x128xf32>,
    %c0_25 = arith.constant 0 : index
    %c2 = arith.constant 2 : index
    %c0_26 = arith.constant 0 : index
    %c0_27 = arith.constant 0 : index
    %39 = vector.load %arg4[%c0_25, %c2, %c0_26, %c0_27] : memref<1x3x8x128xf32, #tpu.memory_space<vmem>>, vector<1x1x8x128xf32>
    %40 = vector.shape_cast %39 : vector<1x1x8x128xf32> to vector<8x128xf32>
    %41 = arith.addf %21, %4 : vector<8x128xf32>
    %42 = vector.shape_cast %41 : vector<8x128xf32> to vector<1x8x128xf32>
    %cst_28 = arith.constant dense<0.000000e+00> : vector<8x128xf32>
    %43 = vector.multi_reduction <add>, %42, %cst_28 [0] : vector<1x8x128xf32> to vector<8x128xf32>
    %44 = arith.addf %40, %43 : vector<8x128xf32>
    %c0_29 = arith.constant 0 : index
    %c2_30 = arith.constant 2 : index
    %c0_31 = arith.constant 0 : index
    %c0_32 = arith.constant 0 : index
    %45 = vector.load %arg4[%c0_29, %c2_30, %c0_31, %c0_32] : memref<1x3x8x128xf32, #tpu.memory_space<vmem>>, vector<1x1x8x128xf32>
    %46 = vector.shape_cast %45 : vector<1x1x8x128xf32> to vector<8x128xf32>
    %47 = vector.shape_cast %44 : vector<8x128xf32> to vector<1x1x8x128xf32>
    tpu.vector_store %arg4[%c0_29, %c2_30, %c0_31, %c0_32], %47 {strides = array<i32>} : memref<1x3x8x128xf32, #tpu.memory_space<vmem>>, vector<1x1x8x128xf32>,
    return
  }
  func.func @transform_0(%arg0: i32, %arg1: i32) -> (i32, i32) {
    %c1_i32 = arith.constant 1 : i32
    %0 = arith.muli %arg0, %c1_i32 : i32
    %1 = arith.addi %0, %arg1 : i32
    %c0_i32 = arith.constant 0 : i32
    %c0_i32_0 = arith.constant 0 : i32
    return %1, %c0_i32 : i32, i32
  }
  func.func @transform_1(%arg0: i32, %arg1: i32) -> (i32, i32) {
    %c1_i32 = arith.constant 1 : i32
    %0 = arith.muli %arg0, %c1_i32 : i32
    %1 = arith.addi %0, %arg1 : i32
    %c0_i32 = arith.constant 0 : i32
    %c0_i32_0 = arith.constant 0 : i32
    return %1, %c0_i32 : i32, i32
  }
  func.func @transform_2(%arg0: i32, %arg1: i32) -> (i32, i32, i32, i32) {
    %c0_i32 = arith.constant 0 : i32
    %c0_i32_0 = arith.constant 0 : i32
    %c0_i32_1 = arith.constant 0 : i32
    %c0_i32_2 = arith.constant 0 : i32
    return %arg0, %c0_i32, %c0_i32_0, %c0_i32_1 : i32, i32, i32, i32
  }
}

</mosaic_0001>

<llo_original>
// kernel: calc_iou_loss.1
$region0: #{calc_iou_loss.1}
  #allocation0 [shape = 'u32[]', space=smem, size = 0x4, offset = 0x4, fixed_abs, tag = 'smem constant byte address 0x4 - core index']
  #allocation1 [shape = 'u32[144,128]{1,0:T(1,128)}', space=vmem, size = 0x12000, scoped, tag = 'internal scratch']
  %s0 = inlined_call_operand.vmem [shape: f32[16,128], index: 0, kind: input, shape index: {}]
  %s1 = inlined_call_operand.vmem [shape: f32[16,128], index: 1, kind: input, shape index: {}]
  %s2 = inlined_call_operand.vmem [shape: f32[2,3,8,128], index: 2, kind: output, shape index: {}]
  %s3 = sld [smem:[#allocation0]]
  $region45: #{calc_iou_loss.1} parent=0
    _
  %s5 = ssub.s32 1, %s3
  %s6 = scalar_select 0, %s5, %s3
  loop: start=0, step=1, limit=4
  $region2: #{calc_iou_loss.1} parent=0 // loop_pre_header
    _
  $region3: #{calc_iou_loss.1} parent=0 // loop_header
    %s8 = sphi 0, %s12
    %p9 = scmp.ge.s32.totalorder %s8, 4
    %s15 = sphi 0, %s27
    %s16 = sphi 0, %s23
    %s17 = sphi 0, %s15
    %s18 = sphi 0, %s16
    %s19 = sphi 0, %s17
    %s20 = sphi 0, %s18
    %s32 = sphi 0, %s34
    %s35 = sphi 0, %s32
    %s36 = sphi 0, %s35
    %s52 = sphi 0, %s36
    %s60 = sphi 0, %s62
    %s63 = sphi 0, %s60
    %s64 = sphi 0, %s63
    %s80 = sphi 0, %s64
    %s86 = sphi 0, %s88
    %s89 = sphi 0, %s86
    %s90 = sphi 0, %s89
    %s106 = sphi 0, %s90
  $region4: #{calc_iou_loss.1} parent=0 // loop_header_branch
    %11 = sbr.rel (%p9) target = $region8
  $region5: #{calc_iou_loss.1} parent=0 // loop_body
    %s13 = ssub.s32 %s8, 1
    %s14 = ssub.s32 %s8, 2
    %s21 = sadd.s32 1, %s16
    %p22 = scmp.ge.s32.totalorder %s21, 1
    %s23 = scalar_select %p22, 0, %s21
    %s24 = sadd.s32 1, %s15
    %s25 = scalar_select %p22, %s24, %s15
    %p26 = scmp.ge.s32.totalorder %s25, 2
    %s27 = scalar_select %p26, 0, %s25
    %s28 = sadd.s32 %s15, %s16
    %s29 = sadd.s32 %s27, %s23
    %s30 = ssub.s32 %s28, %s29
    %p31 = scmp.eq.s32.totalorder %s30, 0
    %s33 = sadd.s32 %s32, 1
    %s34 = scalar_select %p31, %s32, %s33
    %p37 = pneg %p31
    %p38 = scmp.eq.s32.totalorder %s8, 1
    %p39 = por %p37, %p38
    %p40 = scmp.ne.s32.totalorder %s32, %s35
    %p41 = scmp.eq.s32.totalorder %s8, 0
    %p42 = por %p40, %p41
    %p43 = scmp.ne.s32.totalorder %s32, %s35
    %p44 = scmp.eq.s32.totalorder %s13, 1
    %p45 = por %p43, %p44
    %p46 = scmp.ne.s32.totalorder %s35, %s36
    %p47 = scmp.eq.s32.totalorder %s13, 0
    %p48 = por %p46, %p47
    %p49 = scmp.ne.s32.totalorder %s35, %s36
    %p50 = scmp.eq.s32.totalorder %s14, 1
    %p51 = por %p49, %p50
    %p53 = scmp.ne.s32.totalorder %s36, %s52
    %p54 = scmp.eq.s32.totalorder %s14, 0
    %p55 = por %p53, %p54
    %s56 = sadd.s32 %s15, %s16
    %s57 = sadd.s32 %s27, %s23
    %s58 = ssub.s32 %s56, %s57
    %p59 = scmp.eq.s32.totalorder %s58, 0
    %s61 = sadd.s32 %s60, 1
    %s62 = scalar_select %p59, %s60, %s61
    %p65 = pneg %p59
    %p66 = scmp.eq.s32.totalorder %s8, 1
    %p67 = por %p65, %p66
    %p68 = scmp.ne.s32.totalorder %s60, %s63
    %p69 = scmp.eq.s32.totalorder %s8, 0
    %p70 = por %p68, %p69
    %p71 = scmp.ne.s32.totalorder %s60, %s63
    %p72 = scmp.eq.s32.totalorder %s13, 1
    %p73 = por %p71, %p72
    %p74 = scmp.ne.s32.totalorder %s63, %s64
    %p75 = scmp.eq.s32.totalorder %s13, 0
    %p76 = por %p74, %p75
    %p77 = scmp.ne.s32.totalorder %s63, %s64
    %p78 = scmp.eq.s32.totalorder %s14, 1
    %p79 = por %p77, %p78
    %p81 = scmp.ne.s32.totalorder %s64, %s80
    %p82 = scmp.eq.s32.totalorder %s14, 0
    %p83 = por %p81, %p82
    %s84 = ssub.s32 %s15, %s27
    %p85 = scmp.eq.s32.totalorder %s84, 0
    %s87 = sadd.s32 %s86, 1
    %s88 = scalar_select %p85, %s86, %s87
    %p91 = pneg %p85
    %p92 = scmp.eq.s32.totalorder %s8, 1
    %p93 = por %p91, %p92
    %p94 = scmp.ne.s32.totalorder %s86, %s89
    %p95 = scmp.eq.s32.totalorder %s8, 0
    %p96 = por %p94, %p95
    %p97 = scmp.ne.s32.totalorder %s86, %s89
    %p98 = scmp.eq.s32.totalorder %s13, 1
    %p99 = por %p97, %p98
    %p100 = scmp.ne.s32.totalorder %s89, %s90
    %p101 = scmp.eq.s32.totalorder %s13, 0
    %p102 = por %p100, %p101
    %p103 = scmp.ne.s32.totalorder %s89, %s90
    %p104 = scmp.eq.s32.totalorder %s14, 1
    %p105 = por %p103, %p104
    %p107 = scmp.ne.s32.totalorder %s90, %s106
    %p108 = scmp.eq.s32.totalorder %s14, 0
    %p109 = por %p107, %p108
    %p110 = scmp.le.s32.totalorder 1, %s8
    %p111 = scmp.lt.s32.totalorder %s8, 3
    %p112 = pnand %p110, %p111
    %p113 = pneg %p112
    // Predicated region
    $region9: #{calc_iou_loss.1} parent=5 // pred_check
      _
    $region10: #{calc_iou_loss.1} parent=5 // pred_check_branch
      %115 = sbr.rel (%p112) target = $region12
    $region11: #{calc_iou_loss.1} parent=5 // pred_region
      %s116 = ssub.s32 %s8, 1
    $region12: #{calc_iou_loss.1} parent=5 // pred_fallthru
      _
    %p117 = scmp.lt.s32.totalorder %s8, 2
    // Predicated region
    $region13: #{calc_iou_loss.1} parent=5 // pred_check
      %p118 = pneg %p117
    $region14: #{calc_iou_loss.1} parent=5 // pred_check_branch
      %120 = sbr.rel (%p118) target = $region16
    $region15: #{calc_iou_loss.1} parent=5 // pred_region
      // Predicated region
      $region17: #{calc_iou_loss.1} parent=15 // pred_check
        %p121 = pneg %p42
      $region18: #{calc_iou_loss.1} parent=15 // pred_check_branch
        %123 = sbr.rel (%p121) target = $region20
      $region19: #{calc_iou_loss.1} parent=15 // pred_region
        %s124 = sadd.s32 %s15, %s16
        %p125 = scmp.lt.s32.totalorder %s124, 1
        %s126 = scalar_select %p125, %s124, 1
        %s127 = smul.addr %s126, 8
        %s128 = scalar_lea.vmem %s0, %s127
        %s129 = sadd.s32 %s15, %s16
      $region20: #{calc_iou_loss.1} parent=15 // pred_fallthru
        _
      // Predicated region
      $region21: #{calc_iou_loss.1} parent=15 // pred_check
        %p130 = pneg %p70
      $region22: #{calc_iou_loss.1} parent=15 // pred_check_branch
        %132 = sbr.rel (%p130) target = $region24
      $region23: #{calc_iou_loss.1} parent=15 // pred_region
        %s133 = sadd.s32 %s15, %s16
        %p134 = scmp.lt.s32.totalorder %s133, 1
        %s135 = scalar_select %p134, %s133, 1
        %s136 = smul.addr %s135, 8
        %s137 = scalar_lea.vmem %s1, %s136
        %s138 = sadd.s32 %s15, %s16
      $region24: #{calc_iou_loss.1} parent=15 // pred_fallthru
        _
    $region16: #{calc_iou_loss.1} parent=5 // pred_fallthru
      _
    %p139 = scmp.le.s32.totalorder 1, %s8
    %p140 = scmp.lt.s32.totalorder %s8, 3
    %p141 = pnand %p139, %p140
    %p142 = pneg %p141
    // Predicated region
    $region25: #{calc_iou_loss.1} parent=5 // pred_check
      _
    $region26: #{calc_iou_loss.1} parent=5 // pred_check_branch
      %144 = sbr.rel (%p141) target = $region28
    $region27: #{calc_iou_loss.1} parent=5 // pred_region
      %s145 = ssub.s32 %s8, 1
      %s146 = sadd.s32 %s17, %s18
      %p147 = scmp.lt.s32.totalorder %s146, 1
      %s148 = scalar_select %p147, %s146, 1
      %s149 = smul.addr %s148, 8
      %s150 = scalar_lea.vmem %s0, %s149
      %p151 = pneg %p48
      %p152 = pneg %p45
      %s153 = sadd.s32 %s17, %s18
      %p154 = scmp.lt.s32.totalorder %s153, 1
      %s155 = scalar_select %p154, %s153, 1
      %s156 = smul.addr %s155, 8
      %s157 = scalar_lea.vmem %s1, %s156
      %p158 = pneg %p76
      %p159 = pneg %p73
      %p160 = pneg %p102
      %p161 = pneg %p99
      %p162 = scmp.lt.s32.totalorder %s17, 1
      %s163 = scalar_select %p162, %s17, 1
      %s164 = smul.addr %s163, 3
      %s165 = smul.addr %s164, 8
      %s166 = scalar_lea.vmem %s2, %s165
      %s167 = sadd.s32 %s17, %s18
      %p168 = scmp.lt.s32.totalorder %s167, 1
      %s169 = scalar_select %p168, %s167, 1
      %s170 = smul.addr %s169, 8
      %s171 = scalar_lea.vmem %s0, %s170
      %s172 = sadd.s32 %s17, %s18
      %s173 = sadd.s32 %s17, %s18
      %p174 = scmp.lt.s32.totalorder %s173, 1
      %s175 = scalar_select %p174, %s173, 1
      %s176 = smul.addr %s175, 8
      %s177 = scalar_lea.vmem %s1, %s176
      %s178 = sadd.s32 %s17, %s18
      %p179 = scmp.lt.s32.totalorder %s17, 1
      %s180 = scalar_select %p179, %s17, 1
      %s181 = smul.addr %s180, 3
      %s182 = smul.addr %s181, 8
      %s183 = scalar_lea.vmem %s2, %s182
      %p184 = scmp.eq.s32.totalorder %s18, 0
      // Predicated region
      $region29: #{calc_iou_loss.1} parent=27 // pred_check
        %p185 = pneg %p184
      $region30: #{calc_iou_loss.1} parent=27 // pred_check_branch
        %187 = sbr.rel (%p185) target = $region32
      $region31: #{calc_iou_loss.1} parent=27 // pred_region
        %188 = vst [vmem:[%s183] sm:$0xff] 0.0
        %189 = vst [vmem:[%s183 + $0x8] sm:$0xff] 0.0
        %190 = vst [vmem:[%s183 + $0x10] sm:$0xff] 0.0
      $region32: #{calc_iou_loss.1} parent=27 // pred_fallthru
        _
      %v191 = vld [vmem:[%s171] sm:$0xff]
      %v192 = vld [vmem:[%s177] sm:$0xff]
      %v193 = vand.u32 2147483647, %v191
      %v194 = vsub.f32 0.0, %v193
      %v195 = vmul.f32 %v194, 1.442695
      %v196 = vpow.pop %v195
      %v197 = vmax.f32 %v191, 0.0
      %v198 = vmul.f32 %v191, %v192
      %v199 = vsub.f32 %v197, %v198
      %v200 = vadd.f32 %v196, 1.0
      %v201 = vlog2.pop %v200
      %v202 = vmul.f32 %v201, 0.6931472
      %v203 = vmul.f32 -0.5, %v196
      %v204 = vadd.f32 %v203, 1.0
      %v205 = vmul.f32 %v204, %v196
      %v206 = vand.u32 2147483647, %v196
      %vm207 = vcmp.lt.f32.partialorder %v206, 0.0004427343
      %v208 = vsel %vm207, %v205, %v202
      %v209 = vadd.f32 %v199, %v208
      %vm210 = vcmp.ge.f32.partialorder %v191, 0.0
      %v211 = vsel %vm210, 1.0, %v196
      %v212 = vadd.f32 %v196, 1.0
      %v213 = vrcp.pop %v212
      %v214 = vmul.f32 %v211, %v213
      %v215 = vld [vmem:[%s183] sm:$0xff]
      %v216 = vadd.f32 %v209, 0.0
      %v217 = vadd.f32 %v215, %v216
      %218 = vst [vmem:[%s183] sm:$0xff] %v217
      %s219 = scalar_lea.vmem %s183, 8
      %v220 = vld [vmem:[%s219] sm:$0xff]
      %v221 = vmul.f32 %v214, %v192
      %v222 = vadd.f32 %v221, 0.0
      %v223 = vadd.f32 %v220, %v222
      %224 = vst [vmem:[%s219] sm:$0xff] %v223
      %s225 = scalar_lea.vmem %s183, 16
      %v226 = vld [vmem:[%s225] sm:$0xff]
      %v227 = vadd.f32 %v214, %v192
      %v228 = vadd.f32 %v227, 0.0
      %v229 = vadd.f32 %v226, %v228
      %230 = vst [vmem:[%s225] sm:$0xff] %v229
      %p231 = scmp.lt.s32.totalorder %s17, 1
      %s232 = scalar_select %p231, %s17, 1
      %s233 = smul.addr %s232, 3
      %s234 = smul.addr %s233, 8
      %s235 = scalar_lea.vmem %s2, %s234
      // Predicated region
      $region33: #{calc_iou_loss.1} parent=27 // pred_check
        %p236 = pneg %p99
      $region34: #{calc_iou_loss.1} parent=27 // pred_check_branch
        %238 = sbr.rel (%p236) target = $region36
      $region35: #{calc_iou_loss.1} parent=27 // pred_region
        _
      $region36: #{calc_iou_loss.1} parent=27 // pred_fallthru
        _
    $region28: #{calc_iou_loss.1} parent=5 // pred_fallthru
      _
    %p239 = scmp.le.s32.totalorder 2, %s8
    // Predicated region
    $region37: #{calc_iou_loss.1} parent=5 // pred_check
      %p240 = pneg %p239
    $region38: #{calc_iou_loss.1} parent=5 // pred_check_branch
      %242 = sbr.rel (%p240) target = $region40
    $region39: #{calc_iou_loss.1} parent=5 // pred_region
      %s243 = ssub.s32 %s8, 2
      // Predicated region
      $region41: #{calc_iou_loss.1} parent=39 // pred_check
        %p244 = pneg %p105
      $region42: #{calc_iou_loss.1} parent=39 // pred_check_branch
        %246 = sbr.rel (%p244) target = $region44
      $region43: #{calc_iou_loss.1} parent=39 // pred_region
        %p247 = scmp.lt.s32.totalorder %s19, 1
        %s248 = scalar_select %p247, %s19, 1
        %s249 = smul.addr %s248, 3
        %s250 = smul.addr %s249, 8
        %s251 = scalar_lea.vmem %s2, %s250
      $region44: #{calc_iou_loss.1} parent=39 // pred_fallthru
        _
    $region40: #{calc_iou_loss.1} parent=5 // pred_fallthru
      _
  $region6: #{calc_iou_loss.1} parent=0 // loop_footer
    %s12 = sadd.s32 1, %s8
  $region7: #{calc_iou_loss.1} parent=0 // loop_footer_branch
    %7 = sbr.rel target = $region3
  $region8: #{calc_iou_loss.1} parent=0 // loop_exit
    _

</llo_original>
